<compile_context>
chip_gen: v6e
topology: v6e:2x2x1
jax: 0.10.0
libtpu: 0.0.40
codegen_flags: <defaults>
</compile_context>

<pallas_src>
import functools

import jax
import jax.numpy as jnp
from jax.experimental import pallas as pl
from jax.experimental.pallas import tpu as pltpu

STATE_DIM = 4
ACTION_DIM = 2
PHI_DIM = 2 * STATE_DIM + 1     # phi(x) = [1, x, x**2]  -> 9
PSI_DIM = 2 * ACTION_DIM + 1    # psi(u) = [1, u, u**2]  -> 5

XU_ROWS = 8                     # [x(4); u(2); zero pad(2)] -> full 8-sublane tile
PARAM_COLS = 16                 # [m0(1) | a_lin(4) | a_quad(4) | zero pad(7)]
MAX_BLOCK_B = 128 * 1024        # lanes per grid step cap (~9 MiB VMEM, dbl-buffered)


def _round_up(n, m):
    return ((n + m - 1) // m) * m


def _default_num_blocks():
    """Two parallel grid steps on dual-TensorCore v7x, one step otherwise."""
    try:
        kind = jax.devices()[0].device_kind.lower()
        return 2 if "v7" in kind else 1
    except Exception:  # pragma: no cover - CPU/interpret fallback
        return 1


def _soft_koopman_q_kernel(xu_ref, p_ref, out_ref):
    # Dict-major: xu (8, TB) = [x(4); u(2); pad(2)], out (1, TB); batch on lanes.
    xu = xu_ref[...]
    x = xu[0:STATE_DIM, :]                                   # (4, TB)
    u = xu[STATE_DIM:STATE_DIM + ACTION_DIM, :]              # (2, TB)
    x2 = x * x                                               # full-vreg VPU work
    u2 = u * u

    p = p_ref[...]                                           # (8, 16) packed params
    m0 = p[0:PSI_DIM, 0:1]                                   # (5, 1)
    a_lin = p[0:PSI_DIM, 1:1 + STATE_DIM]                    # (5, 4)
    a_quad = p[0:PSI_DIM, 1 + STATE_DIM:1 + 2 * STATE_DIM]   # (5, 4)

    # t[z, b] = M[0, z] + (A_lin @ x)[z, b] + (A_quad @ x*x)[z, b]
    t = (m0
         + jnp.dot(a_lin, x, preferred_element_type=jnp.float32)
         + jnp.dot(a_quad, x2, preferred_element_type=jnp.float32))   # (5, TB)

    # Q[b] = sum_z psi(u)[z, b] * t[z, b]   with psi = [1, u, u*u]
    q = (t[0:1, :]
         + jnp.sum(u * t[1:1 + ACTION_DIM, :], axis=0, keepdims=True)
         + jnp.sum(u2 * t[1 + ACTION_DIM:1 + 2 * ACTION_DIM, :],
                   axis=0, keepdims=True))
    out_ref[...] = q                                         # (1, TB): lane-dense


def fold_params(K, w):
    """Fold the bias-free linear head into the Koopman tensor and pack params.

    Returns one zero-padded (8, 16) f32 tile:
      col 0      : m0      (constant-phi row of M)
      cols 1..4  : a_lin   (linear-x rows of M, transposed)
      cols 5..8  : a_quad  (quadratic-x rows of M, transposed)
    """
    M = jnp.einsum('ijz,i->jz', K, w[0]).astype(jnp.float32)            # (P, S)
    packed = jnp.zeros((XU_ROWS, PARAM_COLS), jnp.float32)
    packed = packed.at[:PSI_DIM, 0].set(M[0, :])
    packed = packed.at[:PSI_DIM, 1:1 + STATE_DIM].set(M[1:1 + STATE_DIM, :].T)
    packed = packed.at[:PSI_DIM, 1 + STATE_DIM:1 + 2 * STATE_DIM].set(
        M[1 + STATE_DIM:1 + 2 * STATE_DIM, :].T)
    return packed


@functools.partial(jax.jit, static_argnames=("block_b", "num_blocks"))
def soft_koopman_q(state, action, params, *, block_b=MAX_BLOCK_B, num_blocks=None):
    if num_blocks is None:
        num_blocks = _default_num_blocks()

    b = state.shape[0]
    bp0 = _round_up(b, 128)
    # Tile = whole padded batch / num_blocks, lane-aligned, capped at block_b.
    tb = _round_up(-(-bp0 // num_blocks), 128)
    tb = max(128, min(tb, _round_up(block_b, 128)))
    bp = _round_up(b, tb)

    # Single dict-major input slab: rows [x(4); u(2); pad(2)], batch on lanes.
    xu = jnp.concatenate([state.astype(jnp.float32).T,
                          action.astype(jnp.float32).T], axis=0)        # (6, b)
    xu = jnp.pad(xu, ((0, XU_ROWS - (STATE_DIM + ACTION_DIM)), (0, bp - b)))

    q_t = pl.pallas_call(
        _soft_koopman_q_kernel,
        out_shape=jax.ShapeDtypeStruct((1, bp), jnp.float32),
        grid=(bp // tb,),
        in_specs=[
            pl.BlockSpec((XU_ROWS, tb), lambda i: (0, i)),
            pl.BlockSpec((XU_ROWS, PARAM_COLS), lambda i: (0, 0)),
        ],
        out_specs=pl.BlockSpec((1, tb), lambda i: (0, i)),
        compiler_params=pltpu.CompilerParams(
            dimension_semantics=("parallel",),
            allow_input_fusion=[True, False]),
        cost_estimate=pl.CostEstimate(
            flops=2 * bp * PHI_DIM * PSI_DIM,
            transcendentals=0,
            bytes_accessed=4 * (bp * (XU_ROWS + 1) + XU_ROWS * PARAM_COLS)),
    )(xu, params)

    return q_t[:, :b].T                      # back to the PyTorch (B, 1) layout


def reference_q(state, action, K, w):
    """Plain-JAX mirror of the PyTorch forward pass (for verification)."""
    b = state.shape[0]
    phi_x = jnp.concatenate(
        [jnp.ones((b, 1), jnp.float32), state, state * state], axis=1).T    # (P, B)
    psi_u = jnp.concatenate(
        [jnp.ones((b, 1), jnp.float32), action, action * action], axis=1).T  # (S, B)
    expected_phi = jnp.einsum('ijz,jb,zb->ib', K, phi_x, psi_u)              # (P, B)
    return expected_phi.T @ w.T                                              # (B, 1)


if __name__ == "__main__":
    key = jax.random.PRNGKey(0)
    k1, k2, k3, k4 = jax.random.split(key, 4)

    B = 8
    state = jax.random.normal(k1, (B, STATE_DIM), jnp.float32)
    action = jax.random.normal(k2, (B, ACTION_DIM), jnp.float32)

    # Deterministic synthetic Koopman tensor and Q-head weight.
    K = 0.1 * jax.random.normal(k3, (PHI_DIM, PHI_DIM, PSI_DIM), jnp.float32)
    w = 0.1 * jax.random.normal(k4, (1, PHI_DIM), jnp.float32)  # Linear(P,1,bias=False).weight

    # Fold the linear head into the Koopman tensor and pack params once.
    params = fold_params(K, w)

    out = soft_koopman_q(state, action, params)
    out = jax.block_until_ready(out)

    ref = reference_q(state, action, K, w)
    assert out.shape == (B, 1), out.shape
    assert jnp.allclose(out, ref, atol=1e-5, rtol=1e-5), (out, ref)

    print("KERNEL_OK")
</pallas_src>

<mosaic_0001>
module attributes {stable_mosaic.version = 11 : i64} {
  func.func @_soft_koopman_q_kernel(%arg0: i32, %arg1: memref<8x128xf32, #tpu.memory_space<vmem>>, %arg2: memref<8x16xf32, #tpu.memory_space<vmem>>, %arg3: memref<1x128xf32, #tpu.memory_space<vmem>>) attributes {dimension_semantics = [#tpu.dimension_semantics<parallel>], iteration_bounds = array<i64: 1>, scalar_prefetch = 0 : i64, scratch_operands = 0 : i64, tpu.core_type = #tpu.core_type<tc>, window_params = [{transform_indices = @transform_0, window_bounds = array<i64: 8, 128>}, {pipeline_mode = #tpu.pipeline_mode<synchronous>, transform_indices = @transform_1, window_bounds = array<i64: 8, 16>}, {transform_indices = @transform_2, window_bounds = array<i64: 1, 128>}]} {
    %c0 = arith.constant 0 : index
    %c0_0 = arith.constant 0 : index
    %0 = vector.load %arg1[%c0, %c0_0] : memref<8x128xf32, #tpu.memory_space<vmem>>, vector<8x128xf32>
    %1 = vector.extract_strided_slice %0 {offsets = [0, 0], sizes = [4, 128], strides = [1, 1]} : vector<8x128xf32> to vector<4x128xf32>
    %2 = vector.extract_strided_slice %0 {offsets = [4, 0], sizes = [2, 128], strides = [1, 1]} : vector<8x128xf32> to vector<2x128xf32>
    %3 = arith.mulf %1, %1 : vector<4x128xf32>
    %4 = arith.mulf %2, %2 : vector<2x128xf32>
    %c0_1 = arith.constant 0 : index
    %c0_2 = arith.constant 0 : index
    %5 = vector.load %arg2[%c0_1, %c0_2] : memref<8x16xf32, #tpu.memory_space<vmem>>, vector<8x16xf32>
    %6 = vector.extract_strided_slice %5 {offsets = [0, 0], sizes = [5, 1], strides = [1, 1]} : vector<8x16xf32> to vector<5x1xf32>
    %7 = vector.extract_strided_slice %5 {offsets = [0, 1], sizes = [5, 4], strides = [1, 1]} : vector<8x16xf32> to vector<5x4xf32>
    %8 = vector.extract_strided_slice %5 {offsets = [0, 5], sizes = [5, 4], strides = [1, 1]} : vector<8x16xf32> to vector<5x4xf32>
    %cst = arith.constant dense<0.000000e+00> : vector<5x128xf32>
    %9 = tpu.matmul %7, %1, %cst {dimension_numbers = #tpu.dot_dimension_numbers<[1], [0], [0], [1], [0, 0, 1, 1], [], []>} : vector<5x4xf32>, vector<4x128xf32>, vector<5x128xf32> -> vector<5x128xf32>
    %10 = vector.broadcast %6 : vector<5x1xf32> to vector<5x128xf32>
    %11 = arith.addf %10, %9 : vector<5x128xf32>
    %cst_3 = arith.constant dense<0.000000e+00> : vector<5x128xf32>
    %12 = tpu.matmul %8, %3, %cst_3 {dimension_numbers = #tpu.dot_dimension_numbers<[1], [0], [0], [1], [0, 0, 1, 1], [], []>} : vector<5x4xf32>, vector<4x128xf32>, vector<5x128xf32> -> vector<5x128xf32>
    %13 = arith.addf %11, %12 : vector<5x128xf32>
    %14 = vector.extract_strided_slice %13 {offsets = [0, 0], sizes = [1, 128], strides = [1, 1]} : vector<5x128xf32> to vector<1x128xf32>
    %15 = vector.extract_strided_slice %13 {offsets = [1, 0], sizes = [2, 128], strides = [1, 1]} : vector<5x128xf32> to vector<2x128xf32>
    %16 = arith.mulf %2, %15 : vector<2x128xf32>
    %cst_4 = arith.constant dense<0.000000e+00> : vector<128xf32>
    %17 = vector.multi_reduction <add>, %16, %cst_4 [0] : vector<2x128xf32> to vector<128xf32>
    %18 = vector.shape_cast %17 : vector<128xf32> to vector<1x128xf32>
    %19 = arith.addf %14, %18 : vector<1x128xf32>
    %20 = vector.extract_strided_slice %13 {offsets = [3, 0], sizes = [2, 128], strides = [1, 1]} : vector<5x128xf32> to vector<2x128xf32>
    %21 = arith.mulf %4, %20 : vector<2x128xf32>
    %cst_5 = arith.constant dense<0.000000e+00> : vector<128xf32>
    %22 = vector.multi_reduction <add>, %21, %cst_5 [0] : vector<2x128xf32> to vector<128xf32>
    %23 = vector.shape_cast %22 : vector<128xf32> to vector<1x128xf32>
    %24 = arith.addf %19, %23 : vector<1x128xf32>
    %c0_6 = arith.constant 0 : index
    %c0_7 = arith.constant 0 : index
    %25 = vector.load %arg3[%c0_6, %c0_7] : memref<1x128xf32, #tpu.memory_space<vmem>>, vector<1x128xf32>
    tpu.vector_store %arg3[%c0_6, %c0_7], %24 {strides = array<i32>} : memref<1x128xf32, #tpu.memory_space<vmem>>, vector<1x128xf32>,
    return
  }
  func.func @transform_0(%arg0: i32) -> (i32, i32) {
    %c0_i32 = arith.constant 0 : i32
    %c0_i32_0 = arith.constant 0 : i32
    return %c0_i32, %arg0 : i32, i32
  }
  func.func @transform_1(%arg0: i32) -> (i32, i32) {
    %c0_i32 = arith.constant 0 : i32
    %c0_i32_0 = arith.constant 0 : i32
    %c0_i32_1 = arith.constant 0 : i32
    return %c0_i32, %c0_i32_0 : i32, i32
  }
  func.func @transform_2(%arg0: i32) -> (i32, i32) {
    %c0_i32 = arith.constant 0 : i32
    %c0_i32_0 = arith.constant 0 : i32
    return %c0_i32, %arg0 : i32, i32
  }
}

</mosaic_0001>

<llo_original>
// kernel: soft_koopman_q.2
$region0: #{soft_koopman_q.2}
  #allocation0 [shape = 'u32[]', space=smem, size = 0x4, offset = 0x4, fixed_abs, tag = 'smem constant byte address 0x4 - core index']
  #allocation1 [shape = 'u32[144,128]{1,0:T(1,128)}', space=vmem, size = 0x12000, scoped, tag = 'internal scratch']
  #allocation2 [shape = 'u32[2048]{0}', space=vmem, size = 0x2000, scoped, tag = 'scoped memory for soft_koopman_q.2']
  #allocation3 [shape = 'u32[2048]{0}', space=vmem, size = 0x2000, scoped, tag = 'scoped memory for soft_koopman_q.2']
  #allocation4 [shape = 'u32[2048]{0}', space=vmem, size = 0x2000, scoped, tag = 'scoped memory for soft_koopman_q.2']
  #allocation5 [shape = 'u32[2048]{0}', space=vmem, size = 0x2000, scoped, tag = 'scoped memory for soft_koopman_q.2']
  #allocation6 [shape = 'u32[2048]{0}', space=vmem, size = 0x2000, scoped, tag = 'scoped memory for soft_koopman_q.2']
  #allocation7 [shape = 'u32[2048]{0}', space=vmem, size = 0x2000, scoped, tag = 'scoped memory for soft_koopman_q.2']
  #allocation8 [shape = 'u32[2048]{0}', space=vmem, size = 0x2000, scoped, tag = 'scoped memory for soft_koopman_q.2']
  #allocation9 [shape = 'u32[2048]{0}', space=vmem, size = 0x2000, scoped, tag = 'scoped memory for soft_koopman_q.2']
  #allocation10 [shape = 'u32[2048]{0}', space=vmem, size = 0x2000, scoped, tag = 'scoped memory for soft_koopman_q.2']
  #allocation11 [shape = 'u32[2048]{0}', space=vmem, size = 0x2000, scoped, tag = 'scoped memory for soft_koopman_q.2']
  %s0 = inlined_call_operand.hbm [shape: f32[8,16], index: 0, kind: input, shape index: {}]
  %s1 = inlined_call_operand.vmem [shape: f32[2,8], index: 1, kind: input, shape index: {}]
  %s2 = inlined_call_operand.<no memory space> [shape: f32[], index: 2, kind: input, shape index: {}]
  %s3 = inlined_call_operand.hbm [shape: f32[4,8], index: 3, kind: input, shape index: {}]
  %s4 = inlined_call_operand.<no memory space> [shape: s32[], index: 4, kind: input, shape index: {}]
  %s5 = inlined_call_operand.<no memory space> [shape: f32[], index: 5, kind: input, shape index: {}]
  %s6 = inlined_call_operand.<no memory space> [shape: s32[], index: 6, kind: input, shape index: {}]
  %s7 = inlined_call_operand.vmem [shape: f32[1,128], index: 7, kind: output, shape index: {}]
  %s8 = sld [smem:[#allocation0]]
  $region30: #{soft_koopman_q.2} parent=0
    _
  %s10 = ssub.s32 1, %s8
  %s11 = scalar_select 0, %s10, %s8
  %v12 = vstv %s2
  %v13 = vstv %s2
  %v14 = vstv %s4
  %v15 = vstv %s5
  %v16 = vstv %s6
  $region1: #{soft_koopman_q.2} parent=0
    #allocation12 [shape = 'u8[2048]{0}', space=vmem, size = 0x800, scoped, tag = 'operand span for operand 3']
    #allocation13 [shape = 's32[1]{0}', space=sflag, size = 0x4, scoped, tag = 'scoped memory for soft_koopman_q.2']
    #allocation14 [shape = 'u8[4096]{0}', space=vmem, size = 0x1000, scoped, tag = 'input window, operand 1, single buffered']
    #allocation15 [shape = 's32[1]{0}', space=sflag, size = 0x4, scoped, tag = 'scoped memory for soft_koopman_q.2']
    #allocation16 [shape = 'u8[4096]{0}', space=vmem, size = 0x1000, dematerialized = true, scoped, tag = 'FusionAdapter Buffer %select_maximum_fusion.1 = f32[8,128]{1,0:T(8,128)} fusion(%param_1.24, %param_2.16, %param_3.12, %param_4.15, %param_5.19, %param_6.11), kind=kLoop, calls=%fused_computation.clone.clone, metadata={op_name="jit(soft_koopman_q)/concatenate" stack_frame_id=9}']
    %17 = vsyncpa [#allocation13], 0
    %18 = vsyncpa [#allocation15], 0
    // Predicated region
    $region2: #{soft_koopman_q.2} parent=1 // pred_check
      _
    $region3: #{soft_koopman_q.2} parent=1 // pred_check_branch
      %20 = sbr.rel (0) target = $region5
    $region4: #{soft_koopman_q.2} parent=1 // pred_region
      %s22 = ssub.s32 1, 0
      %s23 = smul.u32 32, %s22
      %p24 = scmp.lt.s32.totalorder 0, 0
      %s25 = scalar_select %p24, 0, 0
      %s26 = smul.addr %s25, 2
      %s27 = scalar_lea.vmem %s1, %s26
      %s29 = ssub.s32 1, 0
      %s30 = smul.u32 32, %s29
    $region5: #{soft_koopman_q.2} parent=1 // pred_fallthru
      _
    // Predicated region
    $region6: #{soft_koopman_q.2} parent=1 // pred_check
      _
    $region7: #{soft_koopman_q.2} parent=1 // pred_check_branch
      %32 = sbr.rel (0) target = $region9
    $region8: #{soft_koopman_q.2} parent=1 // pred_region
      %s34 = ssub.s32 64, 64
      %35 = vsyncadd [#allocation13], %s34
      %s37 = sshll.u32 [#allocation12], 4
      %s38 = int_to_ptr.vmem [resolvable:$true] %s37
      %40 = dma.hbm_to_vmem [thread:$0]  %s3, 64, %s38, [#allocation13]
    $region9: #{soft_koopman_q.2} parent=1 // pred_fallthru
      _
    // Predicated region
    $region10: #{soft_koopman_q.2} parent=1 // pred_check
      _
    $region11: #{soft_koopman_q.2} parent=1 // pred_check_branch
      %42 = sbr.rel (0) target = $region13
    $region12: #{soft_koopman_q.2} parent=1 // pred_region
      %s44 = ssub.s32 128, 128
      %45 = vsyncadd [#allocation15], %s44
      %s47 = sshll.u32 [#allocation14], 4
      %s48 = int_to_ptr.vmem [resolvable:$true] %s47
      %50 = dma.hbm_to_vmem [thread:$0]  %s0, 128, %s48, [#allocation15]
    $region13: #{soft_koopman_q.2} parent=1 // pred_fallthru
      _
    // Predicated region
    $region14: #{soft_koopman_q.2} parent=1 // pred_check
      _
    $region15: #{soft_koopman_q.2} parent=1 // pred_check_branch
      %52 = sbr.rel (0) target = $region17
    $region16: #{soft_koopman_q.2} parent=1 // pred_region
      %53 = dma.done [#allocation13], 64
    $region17: #{soft_koopman_q.2} parent=1 // pred_fallthru
      _
    // Predicated region
    $region18: #{soft_koopman_q.2} parent=1 // pred_check
      _
    $region19: #{soft_koopman_q.2} parent=1 // pred_check_branch
      %55 = sbr.rel (0) target = $region21
    $region20: #{soft_koopman_q.2} parent=1 // pred_region
      %56 = dma.done [#allocation15], 128
    $region21: #{soft_koopman_q.2} parent=1 // pred_fallthru
      _
    %s58 = ssub.s32 1, 0
    %s59 = smul.u32 32, %s58
    %p60 = scmp.lt.s32.totalorder 0, 0
    %s61 = scalar_select %p60, 0, 0
    %s62 = smul.addr %s61, 2
    %s63 = scalar_lea.vmem %s1, %s62
    %s65 = ssub.s32 1, 0
    %s66 = smul.u32 32, %s65
    %p67 = scmp.lt.s32.totalorder 0, 0
    %s68 = scalar_select %p67, 0, 0
    %s69 = smul.addr %s68, 2
    %s70 = scalar_lea.vmem %s1, %s69
    %s72 = ssub.s32 1, 0
    %s73 = smul.u32 32, %s72
    %s74 = ssub.s32 0, 0
    %p75 = scmp.lt.s32.totalorder %s74, 0
    %s76 = scalar_select %p75, 0, 255
    %s77 = sand.u32 3, %s76
    %s78 = sand.u32 3, %s77
    %v79 = vld [vmem:[%s70] sm:%s78]
    %v80 = vlaneseq
    %v81 = vshrl.u32 %v80, 7
    %v82 = vadd.s32 %v81, 8
    %vm83 = vcmp.lt.s32.totalorder %v82, 10
    %v84 = vsel %vm83, %v79, %v12
    %v85 = vlaneseq
    %v86 = vand.u32 %v85, 127
    %vm88 = vcmp.lt.s32.totalorder %v86, 8
    %v89 = vsel %vm88, %v84, %v12
    %vm90 = vcmask 1043456
    %v91 = vsel %vm90, %v89, %v12
    %v92 = vrot.slane %v91, 4
    %v93 = vld [vmem:[#allocation12] sm:$0xf]
    %v94 = vlaneseq
    %v95 = vshrl.u32 %v94, 7
    %vm97 = vcmp.lt.s32.totalorder %v95, 4
    %v98 = vsel %vm97, %v93, %v13
    %v99 = vlaneseq
    %v100 = vand.u32 %v99, 127
    %vm102 = vcmp.lt.s32.totalorder %v100, 8
    %v103 = vsel %vm102, %v98, %v13
    %v104 = vlaneseq
    %v105 = vshrl.u32 %v104, 7
    %108 = xla_tuple %v105, %v16
    %109 = xla_tuple %108
    %vm110 = vcmp.lt.s32.totalorder %v105, %v16
    %v111 = vsel %vm110, 1, 0
    %112 = xla_tuple %v111
    %v113 = vlaneseq
    %v114 = vand.u32 %v113, 127
    %117 = xla_tuple %v114, %v14
    %118 = xla_tuple %117
    %vm119 = vcmp.lt.s32.totalorder %v114, %v14
    %v120 = vsel %vm119, 1, 0
    %121 = xla_tuple %v120
    %v122 = vand.u32 %v111, %v120
    %123 = xla_tuple %v111, %v103, %v15
    %124 = xla_tuple %123
    %v125 = vsel %vm110, %v103, %v15
    %126 = xla_tuple %v125
    %127 = xla_tuple %v122, %v125, %v15
    %128 = xla_tuple %127
    %vm129 = vcmp.ne.s32.totalorder %v122, 0
    %v130 = vsel %vm129, %v125, %v15
    %131 = xla_tuple %v130
    %132 = xla_tuple %v111, %v92, %v15
    %133 = xla_tuple %132
    %v134 = vsel %vm110, %v92, %v15
    %135 = xla_tuple %v134
    %136 = xla_tuple %v122, %v134, %v15
    %137 = xla_tuple %136
    %vm138 = vcmp.ne.s32.totalorder %v122, 0
    %v139 = vsel %vm138, %v134, %v15
    %140 = xla_tuple %v139
    %141 = xla_tuple %v130, %v139
    %142 = xla_tuple %141
    %v143 = vmax.f32 %v130, %v139
    %144 = xla_tuple %v143
    %s146 = ssub.s32 256, 1
    %147 = vst [vmem:[#allocation16] sm:%s146] %v143
    %v148 = vld [vmem:[#allocation16] sm:$0xff]
    %v149 = vmul.f32 %v148, %v148
    %v150 = vld [vmem:[#allocation14] sm:$0xff]
    %152 = vrot.lane.b32.xlu0 %v150, 127
    %v153 = vpop.permute.xlu0 %152
    %vm154 = vcmask 31744
    %v155 = vsel %vm154, %v153, 0
    %vm157 = vcmask 1043456
    %v159 = vsel %vm157, %v148, 0
    %161 = vmatprep.subr.mxu0 0.0
    %162 = vmatpush1.msra.mxu0 0.0
    %163 = vmatprep.subr.mxu0 0.0
    %164 = vmatpush1.msra.mxu0 0.0
    %165 = vmatprep.subr.mxu0 0.0
    %166 = vmatpush1.msra.mxu0 0.0
    %167 = vmatprep.subr.mxu0 0.0
    %168 = vmatpush1.msra.mxu0 0.0
    %169 = vmatprep.subr.mxu0 0.0
    %170 = vmatpush1.msra.mxu0 0.0
    %171 = vmatprep.subr.mxu0 0.0
    %172 = vmatpush1.msra.mxu0 0.0
    %173 = vmatprep.subr.mxu0 0.0
    %174 = vmatpush1.msra.mxu0 0.0
    %175 = vmatprep.subr.mxu0 0.0
    %176 = vmatpush1.msra.mxu0 0.0
    %177 = vmatprep.subr.mxu0 0.0
    %178 = vmatpush1.msra.mxu0 0.0
    %179 = vmatprep.subr.mxu0 0.0
    %180 = vmatpush1.msra.mxu0 0.0
    %181 = vmatprep.subr.mxu0 0.0
    %182 = vmatpush1.msra.mxu0 0.0
    %183 = vmatprep.subr.mxu0 0.0
    %184 = vmatpush1.msra.mxu0 0.0
    %185 = vmatprep.subr.mxu0 0.0
    %186 = vmatpush1.msra.mxu0 0.0
    %187 = vmatprep.subr.mxu0 0.0
    %188 = vmatpush1.msra.mxu0 0.0
    %189 = vmatprep.subr.mxu0 0.0
    %190 = vmatpush1.msra.mxu0 0.0
    %191 = vmatprep.subr.mxu0 0.0
    %192 = vmatpush1.msra.mxu0 %v159
    %193 = vmatprep.subr.mxu0 0.0
    %194 = vmatpush2.msra.mxu0 0.0
    %195 = vmatprep.subr.mxu0 0.0
    %196 = vmatpush2.msra.mxu0 0.0
    %197 = vmatprep.subr.mxu0 0.0
    %198 = vmatpush2.msra.mxu0 0.0
    %199 = vmatprep.subr.mxu0 0.0
    %200 = vmatpush2.msra.mxu0 0.0
    %201 = vmatprep.subr.mxu0 0.0
    %202 = vmatpush2.msra.mxu0 0.0
    %203 = vmatprep.subr.mxu0 0.0
    %204 = vmatpush2.msra.mxu0 0.0
    %205 = vmatprep.subr.mxu0 0.0
    %206 = vmatpush2.msra.mxu0 0.0
    %207 = vmatprep.subr.mxu0 0.0
    %208 = vmatpush2.msra.mxu0 0.0
    %209 = vmatprep.subr.mxu0 0.0
    %210 = vmatpush2.msra.mxu0 0.0
    %211 = vmatprep.subr.mxu0 0.0
    %212 = vmatpush2.msra.mxu0 0.0
    %213 = vmatprep.subr.mxu0 0.0
    %214 = vmatpush2.msra.mxu0 0.0
    %215 = vmatprep.subr.mxu0 0.0
    %216 = vmatpush2.msra.mxu0 0.0
    %217 = vmatprep.subr.mxu0 0.0
    %218 = vmatpush2.msra.mxu0 0.0
    %219 = vmatprep.subr.mxu0 0.0
    %220 = vmatpush2.msra.mxu0 0.0
    %221 = vmatprep.subr.mxu0 0.0
    %222 = vmatpush2.msra.mxu0 0.0
    %223 = vmatprep.subr.mxu0 0.0
    %224 = vmatpush2.msra.mxu0 0.0
    %225 = vmatprep.mubr.f32.mxu0 0.0
    %226 = vmatmul.mubr.f32.gmra.mxu0 %v155
    %v227 = vpop.f32.mrf.mxu0
    %v228 = vadd.f32 0.0, %v227
    %v229 = vpop.f32.mrf.mxu0
    %230 = vdwg.mxu0
    %231 = vset.pattern.permute.xlu0 0
    %232 = vperm.xlu0 %231, %v150
    %v233 = vpop.permute.xlu0 %232
    %v235 = vadd.f32 %v233, %v228
    %236 = vrot.lane.b32.xlu0 %v150, 123
    %v237 = vpop.permute.xlu0 %236
    %v238 = vsel %vm154, %v237, 0
    %v241 = vsel %vm157, %v149, 0
    %243 = vmatprep.subr.mxu0 0.0
    %244 = vmatpush1.msra.mxu0 0.0
    %245 = vmatprep.subr.mxu0 0.0
    %246 = vmatpush1.msra.mxu0 0.0
    %247 = vmatprep.subr.mxu0 0.0
    %248 = vmatpush1.msra.mxu0 0.0
    %249 = vmatprep.subr.mxu0 0.0
    %250 = vmatpush1.msra.mxu0 0.0
    %251 = vmatprep.subr.mxu0 0.0
    %252 = vmatpush1.msra.mxu0 0.0
    %253 = vmatprep.subr.mxu0 0.0
    %254 = vmatpush1.msra.mxu0 0.0
    %255 = vmatprep.subr.mxu0 0.0
    %256 = vmatpush1.msra.mxu0 0.0
    %257 = vmatprep.subr.mxu0 0.0
    %258 = vmatpush1.msra.mxu0 0.0
    %259 = vmatprep.subr.mxu0 0.0
    %260 = vmatpush1.msra.mxu0 0.0
    %261 = vmatprep.subr.mxu0 0.0
    %262 = vmatpush1.msra.mxu0 0.0
    %263 = vmatprep.subr.mxu0 0.0
    %264 = vmatpush1.msra.mxu0 0.0
    %265 = vmatprep.subr.mxu0 0.0
    %266 = vmatpush1.msra.mxu0 0.0
    %267 = vmatprep.subr.mxu0 0.0
    %268 = vmatpush1.msra.mxu0 0.0
    %269 = vmatprep.subr.mxu0 0.0
    %270 = vmatpush1.msra.mxu0 0.0
    %271 = vmatprep.subr.mxu0 0.0
    %272 = vmatpush1.msra.mxu0 0.0
    %273 = vmatprep.subr.mxu0 0.0
    %274 = vmatpush1.msra.mxu0 %v241
    %275 = vmatprep.subr.mxu0 0.0
    %276 = vmatpush2.msra.mxu0 0.0
    %277 = vmatprep.subr.mxu0 0.0
    %278 = vmatpush2.msra.mxu0 0.0
    %279 = vmatprep.subr.mxu0 0.0
    %280 = vmatpush2.msra.mxu0 0.0
    %281 = vmatprep.subr.mxu0 0.0
    %282 = vmatpush2.msra.mxu0 0.0
    %283 = vmatprep.subr.mxu0 0.0
    %284 = vmatpush2.msra.mxu0 0.0
    %285 = vmatprep.subr.mxu0 0.0
    %286 = vmatpush2.msra.mxu0 0.0
    %287 = vmatprep.subr.mxu0 0.0
    %288 = vmatpush2.msra.mxu0 0.0
    %289 = vmatprep.subr.mxu0 0.0
    %290 = vmatpush2.msra.mxu0 0.0
    %291 = vmatprep.subr.mxu0 0.0
    %292 = vmatpush2.msra.mxu0 0.0
    %293 = vmatprep.subr.mxu0 0.0
    %294 = vmatpush2.msra.mxu0 0.0
    %295 = vmatprep.subr.mxu0 0.0
    %296 = vmatpush2.msra.mxu0 0.0
    %297 = vmatprep.subr.mxu0 0.0
    %298 = vmatpush2.msra.mxu0 0.0
    %299 = vmatprep.subr.mxu0 0.0
    %300 = vmatpush2.msra.mxu0 0.0
    %301 = vmatprep.subr.mxu0 0.0
    %302 = vmatpush2.msra.mxu0 0.0
    %303 = vmatprep.subr.mxu0 0.0
    %304 = vmatpush2.msra.mxu0 0.0
    %305 = vmatprep.subr.mxu0 0.0
    %306 = vmatpush2.msra.mxu0 0.0
    %307 = vmatprep.mubr.f32.mxu0 0.0
    %308 = vmatmul.mubr.f32.gmra.mxu0 %v238
    %v309 = vpop.f32.mrf.mxu0
    %v310 = vadd.f32 0.0, %v309
    %v311 = vpop.f32.mrf.mxu0
    %312 = vdwg.mxu0
    %v313 = vadd.f32 %v235, %v310
    %v315 = vrot.slane %v313, 5
    %v317 = vmul.f32 %v148, %v315
    %v319 = vrot.slane %v317, 4
    %vm321 = vcmask 1041408
    %v322 = vsel %vm321, %v319, 0.0
    %v323 = vrot.slane %v322, 4
    %v324 = vadd.f32 %v322, %v323
    %v325 = vrot.slane %v324, 2
    %v326 = vadd.f32 %v324, %v325
    %v327 = vrot.slane %v326, 1
    %v328 = vadd.f32 %v326, %v327
    %v329 = vadd.f32 %v313, %v328
    %v330 = vrot.slane %v313, 7
    %v332 = vmul.f32 %v149, %v330
    %v334 = vrot.slane %v332, 4
    %v336 = vsel %vm321, %v334, 0.0
    %v337 = vrot.slane %v336, 4
    %v338 = vadd.f32 %v336, %v337
    %v339 = vrot.slane %v338, 2
    %v340 = vadd.f32 %v338, %v339
    %v341 = vrot.slane %v340, 1
    %v342 = vadd.f32 %v340, %v341
    %v343 = vadd.f32 %v329, %v342
    %344 = vst [vmem:[%s7] sm:$0x1] %v343
    // Predicated region
    $region22: #{soft_koopman_q.2} parent=1 // pred_check
      _
    $region23: #{soft_koopman_q.2} parent=1 // pred_check_branch
      %346 = sbr.rel (0) target = $region25
    $region24: #{soft_koopman_q.2} parent=1 // pred_region
      _
    $region25: #{soft_koopman_q.2} parent=1 // pred_fallthru
      _
    // Predicated region
    $region26: #{soft_koopman_q.2} parent=1 // pred_check
      _
    $region27: #{soft_koopman_q.2} parent=1 // pred_check_branch
      %348 = sbr.rel (0) target = $region29
    $region28: #{soft_koopman_q.2} parent=1 // pred_region
      _
    $region29: #{soft_koopman_q.2} parent=1 // pred_fallthru
      _
    %349 = vsyncpa [#allocation13], 1
    %350 = vsyncpa [#allocation15], 1

</llo_original>
